<compile_context>
chip_gen: v6e
topology: v6e:2x2x1
jax: 0.10.0
libtpu: 0.0.40
codegen_flags: <defaults>
</compile_context>

<pallas_src>
import jax
import jax.numpy as jnp
from jax import lax
from jax.experimental import pallas as pl
from jax.experimental.pallas import tpu as pltpu


_LANE = 128
_MAX_TN = 1024                          # >1024 buys <1% extra HBM-roofline fraction
_COMPILER_HEADROOM = 2 * 1024 * 1024    # room for Mosaic-internal scratch


def _vmem_limit_bytes() -> int:
    """~75% of per-core VMEM: 48 MiB on v7x, 96 MiB on v5e/v6e; 48 MiB fallback."""
    cap = None
    try:
        info = pltpu.get_tpu_info()
        for name in ("vmem_capacity_bytes", "vmem_bytes", "vmem_size_bytes"):
            cap = getattr(info, name, None)
            if cap:
                break
    except Exception:
        cap = None
    if not cap:
        cap = 64 * 1024 * 1024          # conservative: v7x per-TensorCore VMEM
    return int(cap) * 3 // 4


def _pick_num_patch_tile(num_patch: int, per_tn_bytes: int,
                         resident_bytes: int, budget_bytes: int) -> int:
    """Largest lane-aligned num_patch tile whose double-buffered x/out blocks plus
    the resident weight/bias fit the VMEM budget (full extent if everything fits)."""
    if num_patch <= _LANE:
        return num_patch                # full-extent block is always layout-legal
    avail = budget_bytes - resident_bytes
    tn = avail // per_tn_bytes if avail > 0 else _LANE
    tn = min(int(tn), _MAX_TN, num_patch)
    if tn >= num_patch:
        return num_patch
    return max((tn // _LANE) * _LANE, _LANE)


def _blockdiag_kernel(x_ref, w_ref, b_ref, o_ref):
    # x_ref: (nvars*d_model, tn)                -- native layout, num_patch on lanes
    # w_ref: (nvars*d_model, nvars*patch_len)   -- block-diagonal expanded weight
    # b_ref: (1, nvars*patch_len)
    # o_ref: (tn, nvars*patch_len)
    #
    # The lhs contraction on dim 0 is intentional: x stays in its native HBM
    # layout so no wrapper transpose is ever paid.  Any lhs relayout Mosaic may
    # insert is in-VMEM and hides under the x DMA in the mem-bound regime this
    # path is restricted to (nvp <= 128); audit with pl.lower_as_mlir before
    # restructuring (per review).
    y = lax.dot_general(
        x_ref[...], w_ref[...],
        dimension_numbers=(((0,), (0,)), ((), ())),
        preferred_element_type=jnp.float32)
    o_ref[...] = (y + b_ref[...].astype(jnp.float32)).astype(o_ref.dtype)


def _per_variable_kernel(x_ref, w_ref, b_ref, o_ref):
    # x_ref: (nvars, d_model, tn)   w_ref: (d_model, patch_len)
    # b_ref: (1, patch_len)         o_ref: (tn, nvars*patch_len)
    #
    # Used when nvars*patch_len is large: plain (d_model, patch_len) weight, no
    # O(nvars^2) expansion, no zero-MACs (which flip v5e MXU-bound).  nvars is a
    # static shape, so the loop fully unrolls, all output lane slices are static,
    # and the HBM store stays one dense (tn, nvars*patch_len) block per step.
    nvars = x_ref.shape[0]
    patch_len = w_ref.shape[1]
    bias = b_ref[...].astype(jnp.float32)
    for v in range(nvars):
        y = lax.dot_general(
            x_ref[v], w_ref[...],
            dimension_numbers=(((0,), (0,)), ((), ())),
            preferred_element_type=jnp.float32)
        o_ref[:, v * patch_len:(v + 1) * patch_len] = (y + bias).astype(o_ref.dtype)


def make_pretrain_head(weight, bias, nvars, *, compute_dtype=None, mode="auto"):
    """Build a jitted forward(x) for PretrainHead.

    weight: [patch_len, d_model] (PyTorch nn.Linear layout); bias: [patch_len].
    All parameter expansion / transposition happens ONCE here (hoisted out of the
    per-call wrapper).  compute_dtype (e.g. jnp.bfloat16) optionally narrows the
    DMA/matmul dtype; accumulation stays float32; output keeps x.dtype.
    """
    if mode not in ("auto", "blockdiag", "pervar"):
        raise ValueError(f"unknown mode {mode!r}")
    patch_len, d_model = weight.shape
    cdt = jnp.dtype(compute_dtype) if compute_dtype is not None else jnp.dtype(weight.dtype)
    in_item = cdt.itemsize
    vd, nvp = nvars * d_model, nvars * patch_len

    vmem_limit = _vmem_limit_bytes()
    budget = vmem_limit - _COMPILER_HEADROOM

    if mode == "auto":
        w_exp_bytes = vd * nvp * in_item
        # Block-diagonal only while its zero-MACs hide under the x DMA (nvp <= 128
        # keeps the kernel HBM-bound on every generation, incl. v5e) and the
        # expanded weight is a small VMEM fraction (matters most on v7x's 64 MiB).
        mode = "blockdiag" if (nvp <= _LANE and 2 * w_exp_bytes <= budget // 8) else "pervar"

    w = jnp.asarray(weight).astype(cdt)
    b = jnp.asarray(bias).astype(cdt)
    if mode == "blockdiag":
        # w_exp[v*D + d, v*P + p] = W[p, d]  (zeros off the block diagonal).
        w_arr = jnp.kron(jnp.eye(nvars, dtype=cdt), w.T)       # (vd, nvp)
        b_arr = jnp.tile(b, nvars).reshape(1, nvp)              # (1, nvp)
    else:
        w_arr = w.T                                             # (d_model, patch_len)
        b_arr = b.reshape(1, patch_len)                         # (1, patch_len)
    # Resident (constant-index) blocks are double-buffered by the default
    # pipeliner -> budget them at 2x.  (pipeline_mode=pl.Buffered(1) would reclaim
    # the duplicate on v7x; kept at the default depth here for lowering safety.)
    resident_bytes = 2 * (int(w_arr.size) + int(b_arr.size)) * in_item

    def forward(x):
        if x.ndim != 4 or x.shape[1] != nvars or x.shape[2] != d_model:
            raise ValueError(
                f"expected x of shape [bs, {nvars}, {d_model}, num_patch], got {x.shape}")
        bs, _, _, num_patch = x.shape
        out_dtype = x.dtype
        out_item = jnp.dtype(out_dtype).itemsize
        # NOTE: keep compute_dtype equal to the producer's dtype; a real cast here
        # is an extra HBM round trip unless XLA fuses it into x's producer.
        xc = x.astype(cdt) if x.dtype != cdt else x

        # VMEM-budget-aware tile: double-buffered x column (vd) + out row (nvp).
        per_tn = 2 * (vd * in_item + nvp * out_item)
        tn = _pick_num_patch_tile(num_patch, per_tn, resident_bytes, budget)
        n_tiles = pl.cdiv(num_patch, tn)
        # v7x megacore balance: avoid a single-step "parallel" grid when we can
        # split num_patch into lane-aligned halves (negligible cost on v5e/v6e).
        if bs * n_tiles < 2 and num_patch > _LANE:
            tn = max(_LANE, pl.cdiv(pl.cdiv(num_patch, 2), _LANE) * _LANE)
            n_tiles = pl.cdiv(num_patch, tn)

        bytes_accessed = (bs * vd * num_patch * in_item                 # x read
                          + bs * num_patch * nvp * out_item             # out write
                          + (int(w_arr.size) + int(b_arr.size)) * in_item)
        cparams = pltpu.CompilerParams(
            dimension_semantics=("parallel", "parallel"),
            vmem_limit_bytes=int(vmem_limit))
        # NOTE: output minor dim is nvp; stores are fully lane-dense only when
        # nvp % 128 == 0 (pick production shapes accordingly).  We deliberately do
        # NOT pad+slice: for a mem-bound kernel the wrapper slice copy costs more
        # HBM traffic than the masked-vst overhead it would remove.

        if mode == "blockdiag":
            cost = pl.CostEstimate(flops=2 * bs * num_patch * vd * nvp,
                                   transcendentals=0,
                                   bytes_accessed=int(bytes_accessed))
            x3 = xc.reshape(bs, vd, num_patch)       # free: merge (nvars, d_model)
            out3 = pl.pallas_call(
                _blockdiag_kernel,
                out_shape=jax.ShapeDtypeStruct((bs, num_patch, nvp), out_dtype),
                grid=(bs, n_tiles),
                in_specs=[
                    pl.BlockSpec((None, vd, tn), lambda bi, j: (bi, 0, j)),
                    pl.BlockSpec((vd, nvp), lambda bi, j: (0, 0)),      # resident
                    pl.BlockSpec((1, nvp), lambda bi, j: (0, 0)),       # resident
                ],
                out_specs=pl.BlockSpec((None, tn, nvp), lambda bi, j: (bi, j, 0)),
                compiler_params=cparams,
                cost_estimate=cost,
            )(x3, w_arr, b_arr)
        else:
            cost = pl.CostEstimate(flops=2 * bs * num_patch * vd * patch_len,
                                   transcendentals=0,
                                   bytes_accessed=int(bytes_accessed))
            out3 = pl.pallas_call(
                _per_variable_kernel,
                out_shape=jax.ShapeDtypeStruct((bs, num_patch, nvp), out_dtype),
                grid=(bs, n_tiles),
                in_specs=[
                    pl.BlockSpec((None, nvars, d_model, tn),
                                 lambda bi, j: (bi, 0, 0, j)),
                    pl.BlockSpec((d_model, patch_len), lambda bi, j: (0, 0)),
                    pl.BlockSpec((1, patch_len), lambda bi, j: (0, 0)),
                ],
                out_specs=pl.BlockSpec((None, tn, nvp), lambda bi, j: (bi, j, 0)),
                compiler_params=cparams,
                cost_estimate=cost,
            )(xc, w_arr, b_arr)

        # Free reshape: split nvars*patch_len -> (nvars, patch_len); no permute.
        return out3.reshape(bs, num_patch, nvars, patch_len)

    return jax.jit(forward)


if __name__ == "__main__":
    # Small shapes consistent with the module's forward contract.
    bs, nvars, d_model, num_patch, patch_len = 2, 4, 32, 8, 16

    key = jax.random.PRNGKey(0)
    kx, kw, kb = jax.random.split(key, 3)

    x = jax.random.normal(kx, (bs, nvars, d_model, num_patch), dtype=jnp.float32)

    # Deterministic nn.Linear(d_model, patch_len)-shaped parameters.
    bound = 1.0 / (d_model ** 0.5)
    weight = jax.random.uniform(kw, (patch_len, d_model), jnp.float32,
                                minval=-bound, maxval=bound)
    bias = jax.random.uniform(kb, (patch_len,), jnp.float32,
                              minval=-bound, maxval=bound)

    # Reference in plain JAX (same semantics as the PyTorch forward, eval mode).
    ref = jnp.einsum("bvdn,pd->bnvp", x, weight,
                     precision=lax.Precision.HIGHEST) + bias

    # Exercise both kernel paths plus the auto selector.
    for mode in ("blockdiag", "pervar", "auto"):
        fwd = make_pretrain_head(weight, bias, nvars, mode=mode)
        out = jax.block_until_ready(fwd(x))
        assert out.shape == (bs, num_patch, nvars, patch_len), (mode, out.shape)
        err = float(jnp.max(jnp.abs(out - ref)))
        assert jnp.allclose(out, ref, atol=1e-4, rtol=1e-4), (mode, err)

    print("KERNEL_OK")
</pallas_src>

<mosaic_0001>
module attributes {stable_mosaic.version = 11 : i64} {
  func.func @_blockdiag_kernel(%arg0: i32, %arg1: i32, %arg2: memref<1x128x8xf32, #tpu.memory_space<vmem>>, %arg3: memref<128x64xf32, #tpu.memory_space<vmem>>, %arg4: memref<1x64xf32, #tpu.memory_space<vmem>>, %arg5: memref<1x8x64xf32, #tpu.memory_space<vmem>>) attributes {dimension_semantics = [#tpu.dimension_semantics<parallel>, #tpu.dimension_semantics<parallel>], iteration_bounds = array<i64: 2, 1>, scalar_prefetch = 0 : i64, scratch_operands = 0 : i64, tpu.core_type = #tpu.core_type<tc>, window_params = [{transform_indices = @transform_0, window_bounds = array<i64: 1, 128, 8>}, {pipeline_mode = #tpu.pipeline_mode<synchronous>, transform_indices = @transform_1, window_bounds = array<i64: 128, 64>}, {pipeline_mode = #tpu.pipeline_mode<synchronous>, transform_indices = @transform_2, window_bounds = array<i64: 1, 64>}, {transform_indices = @transform_3, window_bounds = array<i64: 1, 8, 64>}]} {
    %c0 = arith.constant 0 : index
    %c0_0 = arith.constant 0 : index
    %c0_1 = arith.constant 0 : index
    %0 = vector.load %arg2[%c0, %c0_0, %c0_1] : memref<1x128x8xf32, #tpu.memory_space<vmem>>, vector<1x128x8xf32>
    %1 = vector.shape_cast %0 : vector<1x128x8xf32> to vector<128x8xf32>
    %c0_2 = arith.constant 0 : index
    %c0_3 = arith.constant 0 : index
    %2 = vector.load %arg3[%c0_2, %c0_3] : memref<128x64xf32, #tpu.memory_space<vmem>>, vector<128x64xf32>
    %cst = arith.constant dense<0.000000e+00> : vector<8x64xf32>
    %3 = tpu.matmul %1, %2, %cst {dimension_numbers = #tpu.dot_dimension_numbers<[0], [0], [1], [1], [0, 1, 1, 1], [], []>} : vector<128x8xf32>, vector<128x64xf32>, vector<8x64xf32> -> vector<8x64xf32>
    %c0_4 = arith.constant 0 : index
    %c0_5 = arith.constant 0 : index
    %4 = vector.load %arg4[%c0_4, %c0_5] : memref<1x64xf32, #tpu.memory_space<vmem>>, vector<1x64xf32>
    %5 = vector.broadcast %4 : vector<1x64xf32> to vector<8x64xf32>
    %6 = arith.addf %3, %5 : vector<8x64xf32>
    %c0_6 = arith.constant 0 : index
    %c0_7 = arith.constant 0 : index
    %c0_8 = arith.constant 0 : index
    %7 = vector.load %arg5[%c0_6, %c0_7, %c0_8] : memref<1x8x64xf32, #tpu.memory_space<vmem>>, vector<1x8x64xf32>
    %8 = vector.shape_cast %7 : vector<1x8x64xf32> to vector<8x64xf32>
    %9 = vector.shape_cast %6 : vector<8x64xf32> to vector<1x8x64xf32>
    tpu.vector_store %arg5[%c0_6, %c0_7, %c0_8], %9 {strides = array<i32>} : memref<1x8x64xf32, #tpu.memory_space<vmem>>, vector<1x8x64xf32>,
    return
  }
  func.func @transform_0(%arg0: i32, %arg1: i32) -> (i32, i32, i32) {
    %c0_i32 = arith.constant 0 : i32
    %c0_i32_0 = arith.constant 0 : i32
    return %arg0, %c0_i32, %arg1 : i32, i32, i32
  }
  func.func @transform_1(%arg0: i32, %arg1: i32) -> (i32, i32) {
    %c0_i32 = arith.constant 0 : i32
    %c0_i32_0 = arith.constant 0 : i32
    %c0_i32_1 = arith.constant 0 : i32
    return %c0_i32, %c0_i32_0 : i32, i32
  }
  func.func @transform_2(%arg0: i32, %arg1: i32) -> (i32, i32) {
    %c0_i32 = arith.constant 0 : i32
    %c0_i32_0 = arith.constant 0 : i32
    %c0_i32_1 = arith.constant 0 : i32
    return %c0_i32, %c0_i32_0 : i32, i32
  }
  func.func @transform_3(%arg0: i32, %arg1: i32) -> (i32, i32, i32) {
    %c0_i32 = arith.constant 0 : i32
    %c0_i32_0 = arith.constant 0 : i32
    return %arg0, %arg1, %c0_i32 : i32, i32, i32
  }
}

</mosaic_0001>

<llo_original>
// kernel: forward.1
$region0: #{forward.1}
  #allocation0 [shape = 'u32[]', space=smem, size = 0x4, offset = 0x4, fixed_abs, tag = 'smem constant byte address 0x4 - core index']
  #allocation1 [shape = 'u32[144,128]{1,0:T(1,128)}', space=vmem, size = 0x12000, scoped, tag = 'internal scratch']
  %s0 = inlined_call_operand.vmem [shape: f32[2,128,8], index: 0, kind: input, shape index: {}]
  %s1 = inlined_call_operand.vmem [shape: f32[128,64], index: 1, kind: input, shape index: {}]
  %s2 = inlined_call_operand.vmem [shape: f32[1,64], index: 2, kind: input, shape index: {}]
  %s3 = inlined_call_operand.vmem [shape: f32[2,8,64], index: 3, kind: output, shape index: {}]
  %s4 = sld [smem:[#allocation0]]
  $region45: #{forward.1} parent=0
    _
  %s6 = ssub.s32 1, %s4
  %s7 = scalar_select 0, %s6, %s4
  loop: start=0, step=1, limit=4
  $region2: #{forward.1} parent=0 // loop_pre_header
    _
  $region3: #{forward.1} parent=0 // loop_header
    %s9 = sphi 0, %s13
    %p10 = scmp.ge.s32.totalorder %s9, 4
    %s16 = sphi 0, %s28
    %s17 = sphi 0, %s24
    %s18 = sphi 0, %s16
    %s19 = sphi 0, %s17
    %s20 = sphi 0, %s18
    %s21 = sphi 0, %s19
    %s33 = sphi 0, %s35
    %s36 = sphi 0, %s33
    %s37 = sphi 0, %s36
    %s53 = sphi 0, %s37
    %s57 = sphi 0, %s57
    %s59 = sphi 0, %s57
    %s60 = sphi 0, %s59
    %s74 = sphi 0, %s60
    %s78 = sphi 0, %s78
    %s80 = sphi 0, %s78
    %s81 = sphi 0, %s80
    %s95 = sphi 0, %s81
    %s103 = sphi 0, %s105
    %s106 = sphi 0, %s103
    %s107 = sphi 0, %s106
    %s123 = sphi 0, %s107
  $region4: #{forward.1} parent=0 // loop_header_branch
    %12 = sbr.rel (%p10) target = $region8
  $region5: #{forward.1} parent=0 // loop_body
    %s14 = ssub.s32 %s9, 1
    %s15 = ssub.s32 %s9, 2
    %s22 = sadd.s32 1, %s17
    %p23 = scmp.ge.s32.totalorder %s22, 1
    %s24 = scalar_select %p23, 0, %s22
    %s25 = sadd.s32 1, %s16
    %s26 = scalar_select %p23, %s25, %s16
    %p27 = scmp.ge.s32.totalorder %s26, 2
    %s28 = scalar_select %p27, 0, %s26
    %s29 = ssub.s32 %s16, %s28
    %s30 = ssub.s32 %s17, %s24
    %s31 = sor.u32 %s29, %s30
    %p32 = scmp.eq.s32.totalorder %s31, 0
    %s34 = sadd.s32 %s33, 1
    %s35 = scalar_select %p32, %s33, %s34
    %p38 = pneg %p32
    %p39 = scmp.eq.s32.totalorder %s9, 1
    %p40 = por %p38, %p39
    %p41 = scmp.ne.s32.totalorder %s33, %s36
    %p42 = scmp.eq.s32.totalorder %s9, 0
    %p43 = por %p41, %p42
    %p44 = scmp.ne.s32.totalorder %s33, %s36
    %p45 = scmp.eq.s32.totalorder %s14, 1
    %p46 = por %p44, %p45
    %p47 = scmp.ne.s32.totalorder %s36, %s37
    %p48 = scmp.eq.s32.totalorder %s14, 0
    %p49 = por %p47, %p48
    %p50 = scmp.ne.s32.totalorder %s36, %s37
    %p51 = scmp.eq.s32.totalorder %s15, 1
    %p52 = por %p50, %p51
    %p54 = scmp.ne.s32.totalorder %s37, %s53
    %p55 = scmp.eq.s32.totalorder %s15, 0
    %p56 = por %p54, %p55
    %s58 = sadd.s32 %s57, 1
    %p61 = scmp.eq.s32.totalorder %s9, 1
    %p62 = scmp.ne.s32.totalorder %s57, %s59
    %p63 = scmp.eq.s32.totalorder %s9, 0
    %p64 = por %p62, %p63
    %p65 = scmp.ne.s32.totalorder %s57, %s59
    %p66 = scmp.eq.s32.totalorder %s14, 1
    %p67 = por %p65, %p66
    %p68 = scmp.ne.s32.totalorder %s59, %s60
    %p69 = scmp.eq.s32.totalorder %s14, 0
    %p70 = por %p68, %p69
    %p71 = scmp.ne.s32.totalorder %s59, %s60
    %p72 = scmp.eq.s32.totalorder %s15, 1
    %p73 = por %p71, %p72
    %p75 = scmp.ne.s32.totalorder %s60, %s74
    %p76 = scmp.eq.s32.totalorder %s15, 0
    %p77 = por %p75, %p76
    %s79 = sadd.s32 %s78, 1
    %p82 = scmp.eq.s32.totalorder %s9, 1
    %p83 = scmp.ne.s32.totalorder %s78, %s80
    %p84 = scmp.eq.s32.totalorder %s9, 0
    %p85 = por %p83, %p84
    %p86 = scmp.ne.s32.totalorder %s78, %s80
    %p87 = scmp.eq.s32.totalorder %s14, 1
    %p88 = por %p86, %p87
    %p89 = scmp.ne.s32.totalorder %s80, %s81
    %p90 = scmp.eq.s32.totalorder %s14, 0
    %p91 = por %p89, %p90
    %p92 = scmp.ne.s32.totalorder %s80, %s81
    %p93 = scmp.eq.s32.totalorder %s15, 1
    %p94 = por %p92, %p93
    %p96 = scmp.ne.s32.totalorder %s81, %s95
    %p97 = scmp.eq.s32.totalorder %s15, 0
    %p98 = por %p96, %p97
    %s99 = ssub.s32 %s16, %s28
    %s100 = ssub.s32 %s17, %s24
    %s101 = sor.u32 %s99, %s100
    %p102 = scmp.eq.s32.totalorder %s101, 0
    %s104 = sadd.s32 %s103, 1
    %s105 = scalar_select %p102, %s103, %s104
    %p108 = pneg %p102
    %p109 = scmp.eq.s32.totalorder %s9, 1
    %p110 = por %p108, %p109
    %p111 = scmp.ne.s32.totalorder %s103, %s106
    %p112 = scmp.eq.s32.totalorder %s9, 0
    %p113 = por %p111, %p112
    %p114 = scmp.ne.s32.totalorder %s103, %s106
    %p115 = scmp.eq.s32.totalorder %s14, 1
    %p116 = por %p114, %p115
    %p117 = scmp.ne.s32.totalorder %s106, %s107
    %p118 = scmp.eq.s32.totalorder %s14, 0
    %p119 = por %p117, %p118
    %p120 = scmp.ne.s32.totalorder %s106, %s107
    %p121 = scmp.eq.s32.totalorder %s15, 1
    %p122 = por %p120, %p121
    %p124 = scmp.ne.s32.totalorder %s107, %s123
    %p125 = scmp.eq.s32.totalorder %s15, 0
    %p126 = por %p124, %p125
    %p127 = scmp.le.s32.totalorder 1, %s9
    %p128 = scmp.lt.s32.totalorder %s9, 3
    %p129 = pnand %p127, %p128
    %p130 = pneg %p129
    // Predicated region
    $region9: #{forward.1} parent=5 // pred_check
      _
    $region10: #{forward.1} parent=5 // pred_check_branch
      %132 = sbr.rel (%p129) target = $region12
    $region11: #{forward.1} parent=5 // pred_region
      %s133 = ssub.s32 %s9, 1
      // Predicated region
      $region13: #{forward.1} parent=11 // pred_check
        %p134 = pneg %p70
      $region14: #{forward.1} parent=11 // pred_check_branch
        %136 = sbr.rel (%p134) target = $region16
      $region15: #{forward.1} parent=11 // pred_region
        _
      $region16: #{forward.1} parent=11 // pred_fallthru
        _
      // Predicated region
      $region17: #{forward.1} parent=11 // pred_check
        %p137 = pneg %p91
      $region18: #{forward.1} parent=11 // pred_check_branch
        %139 = sbr.rel (%p137) target = $region20
      $region19: #{forward.1} parent=11 // pred_region
        _
      $region20: #{forward.1} parent=11 // pred_fallthru
        _
    $region12: #{forward.1} parent=5 // pred_fallthru
      _
    %p140 = scmp.lt.s32.totalorder %s9, 2
    // Predicated region
    $region21: #{forward.1} parent=5 // pred_check
      %p141 = pneg %p140
    $region22: #{forward.1} parent=5 // pred_check_branch
      %143 = sbr.rel (%p141) target = $region24
    $region23: #{forward.1} parent=5 // pred_region
      // Predicated region
      $region25: #{forward.1} parent=23 // pred_check
        %p144 = pneg %p43
      $region26: #{forward.1} parent=23 // pred_check_branch
        %146 = sbr.rel (%p144) target = $region28
      $region27: #{forward.1} parent=23 // pred_region
        %p147 = scmp.lt.s32.totalorder %s16, 1
        %s148 = scalar_select %p147, %s16, 1
        %p149 = scmp.lt.s32.totalorder %s17, 0
        %s150 = scalar_select %p149, %s17, 0
        %s151 = smul.addr %s148, 16
        %s152 = sadd.s32 %s150, %s151
        %s153 = smul.addr %s152, 8
        %s154 = scalar_lea.vmem %s0, %s153
      $region28: #{forward.1} parent=23 // pred_fallthru
        _
    $region24: #{forward.1} parent=5 // pred_fallthru
      _
    %p155 = scmp.le.s32.totalorder 1, %s9
    %p156 = scmp.lt.s32.totalorder %s9, 3
    %p157 = pnand %p155, %p156
    %p158 = pneg %p157
    // Predicated region
    $region29: #{forward.1} parent=5 // pred_check
      _
    $region30: #{forward.1} parent=5 // pred_check_branch
      %160 = sbr.rel (%p157) target = $region32
    $region31: #{forward.1} parent=5 // pred_region
      %s161 = ssub.s32 %s9, 1
      %p162 = scmp.lt.s32.totalorder %s18, 1
      %s163 = scalar_select %p162, %s18, 1
      %p164 = scmp.lt.s32.totalorder %s19, 0
      %s165 = scalar_select %p164, %s19, 0
      %s166 = smul.addr %s163, 16
      %s167 = sadd.s32 %s165, %s166
      %s168 = smul.addr %s167, 8
      %s169 = scalar_lea.vmem %s0, %s168
      %p170 = pneg %p49
      %p171 = pneg %p46
      %p172 = pneg %p70
      %p173 = pneg %p67
      %p174 = pneg %p91
      %p175 = pneg %p88
      %p176 = pneg %p119
      %p177 = pneg %p116
      %p178 = scmp.lt.s32.totalorder %s18, 1
      %s179 = scalar_select %p178, %s18, 1
      %p180 = scmp.lt.s32.totalorder %s19, 0
      %s181 = scalar_select %p180, %s19, 0
      %s182 = sadd.s32 %s181, %s179
      %s183 = smul.addr %s182, 8
      %s184 = scalar_lea.vmem %s3, %s183
      %p185 = scmp.lt.s32.totalorder %s18, 1
      %s186 = scalar_select %p185, %s18, 1
      %p187 = scmp.lt.s32.totalorder %s19, 0
      %s188 = scalar_select %p187, %s19, 0
      %s189 = smul.addr %s186, 16
      %s190 = sadd.s32 %s188, %s189
      %s191 = smul.addr %s190, 8
      %s192 = scalar_lea.vmem %s0, %s191
      %p193 = scmp.lt.s32.totalorder %s18, 1
      %s194 = scalar_select %p193, %s18, 1
      %p195 = scmp.lt.s32.totalorder %s19, 0
      %s196 = scalar_select %p195, %s19, 0
      %s197 = sadd.s32 %s196, %s194
      %s198 = smul.addr %s197, 8
      %s199 = scalar_lea.vmem %s3, %s198
      %v200 = vld [vmem:[%s192] sm:$0xff]
      %v201 = vld [vmem:[%s192 + $0x8] sm:$0xff]
      %v202 = vld [vmem:[%s192 + $0x10] sm:$0xff]
      %v203 = vld [vmem:[%s192 + $0x18] sm:$0xff]
      %v204 = vld [vmem:[%s192 + $0x20] sm:$0xff]
      %v205 = vld [vmem:[%s192 + $0x28] sm:$0xff]
      %v206 = vld [vmem:[%s192 + $0x30] sm:$0xff]
      %v207 = vld [vmem:[%s192 + $0x38] sm:$0xff]
      %v208 = vld [vmem:[%s192 + $0x40] sm:$0xff]
      %v209 = vld [vmem:[%s192 + $0x48] sm:$0xff]
      %v210 = vld [vmem:[%s192 + $0x50] sm:$0xff]
      %v211 = vld [vmem:[%s192 + $0x58] sm:$0xff]
      %v212 = vld [vmem:[%s192 + $0x60] sm:$0xff]
      %v213 = vld [vmem:[%s192 + $0x68] sm:$0xff]
      %v214 = vld [vmem:[%s192 + $0x70] sm:$0xff]
      %v215 = vld [vmem:[%s192 + $0x78] sm:$0xff]
      %v216 = vld [vmem:[%s1] sm:$0xff]
      %v217 = vld [vmem:[%s1 + $0x8] sm:$0xff]
      %v218 = vld [vmem:[%s1 + $0x10] sm:$0xff]
      %v219 = vld [vmem:[%s1 + $0x18] sm:$0xff]
      %v220 = vld [vmem:[%s1 + $0x20] sm:$0xff]
      %v221 = vld [vmem:[%s1 + $0x28] sm:$0xff]
      %v222 = vld [vmem:[%s1 + $0x30] sm:$0xff]
      %v223 = vld [vmem:[%s1 + $0x38] sm:$0xff]
      %v224 = vld [vmem:[%s1 + $0x40] sm:$0xff]
      %v225 = vld [vmem:[%s1 + $0x48] sm:$0xff]
      %v226 = vld [vmem:[%s1 + $0x50] sm:$0xff]
      %v227 = vld [vmem:[%s1 + $0x58] sm:$0xff]
      %v228 = vld [vmem:[%s1 + $0x60] sm:$0xff]
      %v229 = vld [vmem:[%s1 + $0x68] sm:$0xff]
      %v230 = vld [vmem:[%s1 + $0x70] sm:$0xff]
      %v231 = vld [vmem:[%s1 + $0x78] sm:$0xff]
      %v232 = vld [vmem:[%s2] sm:$0x1]
      %v234 = vlaneseq
      %v235 = vshrl.u32 %v234, 7
      %v236 = vsub.s32 0, %v235
      %v237 = vrot.slane %v232, %v236
      %239 = vxpose.xlu0.b32.start [1/16] %v200, 128
      %240 = vxpose.xlu0.b32.cont [2/16] %v201, 128
      %241 = vxpose.xlu0.b32.cont [3/16] %v202, 128
      %242 = vxpose.xlu0.b32.cont [4/16] %v203, 128
      %243 = vxpose.xlu0.b32.cont [5/16] %v204, 128
      %244 = vxpose.xlu0.b32.cont [6/16] %v205, 128
      %245 = vxpose.xlu0.b32.cont [7/16] %v206, 128
      %246 = vxpose.xlu0.b32.cont [8/16] %v207, 128
      %247 = vxpose.xlu0.b32.cont [9/16] %v208, 128
      %248 = vxpose.xlu0.b32.cont [10/16] %v209, 128
      %249 = vxpose.xlu0.b32.cont [11/16] %v210, 128
      %250 = vxpose.xlu0.b32.cont [12/16] %v211, 128
      %251 = vxpose.xlu0.b32.cont [13/16] %v212, 128
      %252 = vxpose.xlu0.b32.cont [14/16] %v213, 128
      %253 = vxpose.xlu0.b32.cont [15/16] %v214, 128
      %254 = vxpose.xlu0.b32.end [16/16] %v215, 128
      %v255 = vpop.trf.xlu0
      %v256 = vpop.trf.xlu0
      %v257 = vpop.trf.xlu0
      %v258 = vpop.trf.xlu0
      %v259 = vpop.trf.xlu0
      %v260 = vpop.trf.xlu0
      %v261 = vpop.trf.xlu0
      %v262 = vpop.trf.xlu0
      %v263 = vpop.trf.xlu0
      %v264 = vpop.trf.xlu0
      %v265 = vpop.trf.xlu0
      %v266 = vpop.trf.xlu0
      %v267 = vpop.trf.xlu0
      %v268 = vpop.trf.xlu0
      %v269 = vpop.trf.xlu0
      %v270 = vpop.trf.xlu0
      %271 = vmatprep.subr.mxu0 0.0
      %272 = vmatpush1.msra.mxu0 %v231
      %273 = vmatprep.subr.mxu0 0.0
      %274 = vmatpush1.msra.mxu0 %v230
      %275 = vmatprep.subr.mxu0 0.0
      %276 = vmatpush1.msra.mxu0 %v229
      %277 = vmatprep.subr.mxu0 0.0
      %278 = vmatpush1.msra.mxu0 %v228
      %279 = vmatprep.subr.mxu0 0.0
      %280 = vmatpush1.msra.mxu0 %v227
      %281 = vmatprep.subr.mxu0 0.0
      %282 = vmatpush1.msra.mxu0 %v226
      %283 = vmatprep.subr.mxu0 0.0
      %284 = vmatpush1.msra.mxu0 %v225
      %285 = vmatprep.subr.mxu0 0.0
      %286 = vmatpush1.msra.mxu0 %v224
      %287 = vmatprep.subr.mxu0 0.0
      %288 = vmatpush1.msra.mxu0 %v223
      %289 = vmatprep.subr.mxu0 0.0
      %290 = vmatpush1.msra.mxu0 %v222
      %291 = vmatprep.subr.mxu0 0.0
      %292 = vmatpush1.msra.mxu0 %v221
      %293 = vmatprep.subr.mxu0 0.0
      %294 = vmatpush1.msra.mxu0 %v220
      %295 = vmatprep.subr.mxu0 0.0
      %296 = vmatpush1.msra.mxu0 %v219
      %297 = vmatprep.subr.mxu0 0.0
      %298 = vmatpush1.msra.mxu0 %v218
      %299 = vmatprep.subr.mxu0 0.0
      %300 = vmatpush1.msra.mxu0 %v217
      %301 = vmatprep.subr.mxu0 0.0
      %302 = vmatpush1.msra.mxu0 %v216
      %303 = vmatprep.subr.mxu0 0.0
      %304 = vmatpush2.msra.mxu0 0.0
      %305 = vmatprep.subr.mxu0 0.0
      %306 = vmatpush2.msra.mxu0 0.0
      %307 = vmatprep.subr.mxu0 0.0
      %308 = vmatpush2.msra.mxu0 0.0
      %309 = vmatprep.subr.mxu0 0.0
      %310 = vmatpush2.msra.mxu0 0.0
      %311 = vmatprep.subr.mxu0 0.0
      %312 = vmatpush2.msra.mxu0 0.0
      %313 = vmatprep.subr.mxu0 0.0
      %314 = vmatpush2.msra.mxu0 0.0
      %315 = vmatprep.subr.mxu0 0.0
      %316 = vmatpush2.msra.mxu0 0.0
      %317 = vmatprep.subr.mxu0 0.0
      %318 = vmatpush2.msra.mxu0 0.0
      %319 = vmatprep.subr.mxu0 0.0
      %320 = vmatpush2.msra.mxu0 0.0
      %321 = vmatprep.subr.mxu0 0.0
      %322 = vmatpush2.msra.mxu0 0.0
      %323 = vmatprep.subr.mxu0 0.0
      %324 = vmatpush2.msra.mxu0 0.0
      %325 = vmatprep.subr.mxu0 0.0
      %326 = vmatpush2.msra.mxu0 0.0
      %327 = vmatprep.subr.mxu0 0.0
      %328 = vmatpush2.msra.mxu0 0.0
      %329 = vmatprep.subr.mxu0 0.0
      %330 = vmatpush2.msra.mxu0 0.0
      %331 = vmatprep.subr.mxu0 0.0
      %332 = vmatpush2.msra.mxu0 0.0
      %333 = vmatprep.subr.mxu0 0.0
      %334 = vmatpush2.msra.mxu0 0.0
      %335 = vmatprep.mubr.f32.mxu0 0.0
      %336 = vmatmul.mubr.f32.gmra.mxu0 %v255
      %v337 = vpop.f32.mrf.mxu0
      %v338 = vadd.f32 %v237, %v337
      %v339 = vpop.f32.mrf.mxu0
      %340 = vdwg.mxu0
      %vm341 = vcmask 523264
      %342 = vst.msk [vmem:[%s199] sm:$0xff] %vm341, %v338
      %p343 = scmp.lt.s32.totalorder %s18, 1
      %s344 = scalar_select %p343, %s18, 1
      %p345 = scmp.lt.s32.totalorder %s19, 0
      %s346 = scalar_select %p345, %s19, 0
      %s347 = sadd.s32 %s346, %s344
      %s348 = smul.addr %s347, 8
      %s349 = scalar_lea.vmem %s3, %s348
      // Predicated region
      $region33: #{forward.1} parent=31 // pred_check
        %p350 = pneg %p116
      $region34: #{forward.1} parent=31 // pred_check_branch
        %352 = sbr.rel (%p350) target = $region36
      $region35: #{forward.1} parent=31 // pred_region
        _
      $region36: #{forward.1} parent=31 // pred_fallthru
        _
    $region32: #{forward.1} parent=5 // pred_fallthru
      _
    %p353 = scmp.le.s32.totalorder 2, %s9
    // Predicated region
    $region37: #{forward.1} parent=5 // pred_check
      %p354 = pneg %p353
    $region38: #{forward.1} parent=5 // pred_check_branch
      %356 = sbr.rel (%p354) target = $region40
    $region39: #{forward.1} parent=5 // pred_region
      %s357 = ssub.s32 %s9, 2
      // Predicated region
      $region41: #{forward.1} parent=39 // pred_check
        %p358 = pneg %p122
      $region42: #{forward.1} parent=39 // pred_check_branch
        %360 = sbr.rel (%p358) target = $region44
      $region43: #{forward.1} parent=39 // pred_region
        %p361 = scmp.lt.s32.totalorder %s20, 1
        %s362 = scalar_select %p361, %s20, 1
        %p363 = scmp.lt.s32.totalorder %s21, 0
        %s364 = scalar_select %p363, %s21, 0
        %s365 = sadd.s32 %s364, %s362
        %s366 = smul.addr %s365, 8
        %s367 = scalar_lea.vmem %s3, %s366
      $region44: #{forward.1} parent=39 // pred_fallthru
        _
    $region40: #{forward.1} parent=5 // pred_fallthru
      _
  $region6: #{forward.1} parent=0 // loop_footer
    %s13 = sadd.s32 1, %s9
  $region7: #{forward.1} parent=0 // loop_footer_branch
    %8 = sbr.rel target = $region3
  $region8: #{forward.1} parent=0 // loop_exit
    _

</llo_original>
